<compile_context>
chip_gen: v5e
topology: v5e:2x2
jax: 0.10.0
libtpu: 0.0.40
codegen_flags: <defaults>
</compile_context>

<pallas_src>
import numpy as np
import jax
import jax.numpy as jnp
from jax import lax
from jax.experimental import pallas as pl
from jax.experimental.pallas import tpu as pltpu


def _make_kernel(cat_feat_idxs, cat_offsets, k_cat, w_dtype):
    """Kernel body; static feature layout captured by closure.

    Refs (all VMEM):
      x_ref   : (input_dim, tb)              f32, batch on lanes
      wc_ref  : (post_embed_dim, input_dim)  continuous routing matrix
      we_ref  : (post_embed_dim, k_cat)      block-diagonal transposed embedding tables
      out_ref : (post_embed_dim, tb)         f32
    """
    n_cat = len(cat_feat_idxs)

    def kernel(x_ref, wc_ref, we_ref, out_ref):
        x_t = x_ref[...]                                            # (input_dim, tb) f32
        tb = x_t.shape[1]

        # ---- categorical one-hot selector (k_cat, tb); one shared iota for all features ----
        row_iota = lax.broadcasted_iota(jnp.int32, (k_cat, tb), 0)  # selector-row index
        onehot = jnp.zeros((k_cat, tb), w_dtype)
        for c in range(n_cat):                                      # static, small loop
            f = cat_feat_idxs[c]
            # .long() truncation of the (non-negative) float categorical value
            target = x_t[f:f + 1, :].astype(jnp.int32) + cat_offsets[c]   # (1, tb)
            onehot = onehot + (row_iota == target).astype(w_dtype)        # disjoint rows

        # ---- fused block-structured matmuls on the MXU (f32 accumulation) ----
        acc = jnp.dot(wc_ref[...], x_t.astype(w_dtype),
                      preferred_element_type=jnp.float32)           # continuous columns
        acc = acc + jnp.dot(we_ref[...], onehot,
                            preferred_element_type=jnp.float32)     # embedding lookups

        out_ref[...] = acc.astype(out_ref.dtype)                    # lane-dense slab store

    return kernel


def embedding_generator_forward(x, emb_tables, *, input_dim, cat_idxs, cat_dims,
                                cat_emb_dims, tb=128, weight_dtype=jnp.float32,
                                vmem_headroom_bytes=4 << 20):
    """Pallas forward pass of EmbeddingGenerator.

    emb_tables / cat_dims / cat_emb_dims must be in sorted-cat_idxs order (as the module
    stores them).  Output is (B, post_embed_dim) f32, with columns ordered exactly like the
    PyTorch forward's torch.cat(cols, dim=1).
    """
    x = x.astype(jnp.float32)
    B = x.shape[0]
    n_cat = len(cat_idxs)
    if n_cat == 0:
        # skip_embedding path of the original module
        return x

    continuous_mask = np.ones(input_dim, dtype=bool)
    continuous_mask[np.asarray(cat_idxs, dtype=np.int64)] = False
    post_embed_dim = int(input_dim + int(np.sum(cat_emb_dims)) - n_cat)
    k_cat = int(np.sum(cat_dims))
    cat_offsets = [int(v) for v in np.cumsum([0] + list(cat_dims))[:-1]]

    # ---- wrapper-side static weights, built fully in NumPy (single transfer each) ----
    # W_cont: (post_embed_dim, input_dim), identity columns for continuous features.
    # W_emb : (post_embed_dim, k_cat), transposed embedding tables as diagonal blocks.
    w_cont_np = np.zeros((post_embed_dim, input_dim), dtype=np.float32)
    w_emb_np = np.zeros((post_embed_dim, k_cat), dtype=np.float32)
    cat_feat_idxs = []
    out_off = 0
    cat_counter = 0
    for f in range(input_dim):
        if continuous_mask[f]:
            w_cont_np[out_off, f] = 1.0
            out_off += 1
        else:
            cd = int(cat_dims[cat_counter])
            ed = int(cat_emb_dims[cat_counter])
            tbl = np.asarray(emb_tables[cat_counter], dtype=np.float32)    # (cd, ed)
            ko = cat_offsets[cat_counter]
            w_emb_np[out_off:out_off + ed, ko:ko + cd] = tbl.T
            cat_feat_idxs.append(f)
            out_off += ed
            cat_counter += 1
    w_cont = jnp.asarray(w_cont_np, dtype=weight_dtype)
    w_emb = jnp.asarray(w_emb_np, dtype=weight_dtype)

    # ---- batch tiling: batch on the lane axis, tb a multiple of 128 ----
    tb = max(128, (int(tb) // 128) * 128)
    b_pad = int(pl.cdiv(B, tb)) * tb
    if b_pad != B:
        # zero padding: padded categorical values are 0 -> valid one-hot; rows sliced off below
        x = jnp.pad(x, ((0, b_pad - B), (0, 0)))
    x_t = x.T                                                           # (input_dim, b_pad)

    kernel = _make_kernel(cat_feat_idxs, cat_offsets, k_cat, weight_dtype)

    in_specs = [
        pl.BlockSpec((input_dim, tb), lambda i: (0, i)),                # batch-tiled input
        # resident weights (block index never changes); tiny here.  For very large tables on
        # v7x (64 MiB VMEM) prefer weight_dtype=bf16.
        pl.BlockSpec((post_embed_dim, input_dim), lambda i: (0, 0)),
        pl.BlockSpec((post_embed_dim, k_cat), lambda i: (0, 0)),
    ]
    out_specs = pl.BlockSpec((post_embed_dim, tb), lambda i: (0, i))

    # explicit VMEM budget: double-buffered x/out blocks + 2x resident weights + headroom
    w_itemsize = jnp.dtype(weight_dtype).itemsize
    blk_bytes = (input_dim * tb * 4) + (post_embed_dim * tb * 4)
    w_bytes = post_embed_dim * (input_dim + k_cat) * w_itemsize
    vmem_limit = max(16 << 20, 2 * (blk_bytes + w_bytes) + int(vmem_headroom_bytes))

    out_t = pl.pallas_call(
        kernel,
        out_shape=jax.ShapeDtypeStruct((post_embed_dim, b_pad), jnp.float32),
        grid_spec=pltpu.PrefetchScalarGridSpec(
            num_scalar_prefetch=0,
            grid=(b_pad // tb,),
            in_specs=in_specs,
            out_specs=out_specs,
        ),
        compiler_params=pltpu.CompilerParams(
            dimension_semantics=("parallel",),
            vmem_limit_bytes=int(vmem_limit),
        ),
    )(x_t, w_cont, w_emb)

    return out_t.T[:B]


def reference_forward(x, emb_tables, *, input_dim, cat_idxs, cat_dims):
    """Pure-JAX replica of the PyTorch forward (for correctness check)."""
    continuous_mask = np.ones(input_dim, dtype=bool)
    continuous_mask[np.asarray(cat_idxs, dtype=np.int64)] = False
    cols = []
    cat_counter = 0
    for feat_idx, is_cont in enumerate(continuous_mask):
        if is_cont:
            cols.append(x[:, feat_idx:feat_idx + 1].astype(jnp.float32))
        else:
            idx = x[:, feat_idx].astype(jnp.int32)
            cols.append(jnp.take(emb_tables[cat_counter], idx, axis=0))
            cat_counter += 1
    return jnp.concatenate(cols, axis=1)


if __name__ == "__main__":
    # ---- module config (mirrors EmbeddingGenerator.__init__) ----
    input_dim = 6
    cat_idxs = [3, 1, 4]          # unsorted on purpose (module sorts internally)
    cat_dims = [7, 5, 3]          # modalities per categorical feature (aligned w/ cat_idxs)
    cat_emb_dim = 4               # int => same emb dim for all categorical features
    cat_emb_dims = [cat_emb_dim] * len(cat_idxs)

    # replicate the module's argsort(cat_idxs) reordering of tables
    sorted_order = np.argsort(cat_idxs)
    sorted_cat_idxs = [cat_idxs[i] for i in sorted_order]      # [1, 3, 4]
    sorted_cat_dims = [cat_dims[i] for i in sorted_order]      # [5, 7, 3]
    sorted_emb_dims = [cat_emb_dims[i] for i in sorted_order]  # [4, 4, 4]

    B = 256                       # small demo batch; 2 grid steps at tb=128
    tb = 128

    key = jax.random.PRNGKey(0)
    k_x, *k_tabs = jax.random.split(key, 1 + len(sorted_cat_dims))

    # deterministic embedding tables ~ N(0, 1) (torch.nn.Embedding default init)
    emb_tables = [
        jax.random.normal(k, (cd, ed), dtype=jnp.float32)
        for k, cd, ed in zip(k_tabs, sorted_cat_dims, sorted_emb_dims)
    ]

    # build the input: continuous columns are floats, categorical columns hold
    # integer-valued floats in [0, cat_dim) (the forward applies .long() to them)
    kc, ki = jax.random.split(k_x)
    x = jax.random.normal(kc, (B, input_dim), dtype=jnp.float32)
    for j, (ci, cd) in enumerate(zip(sorted_cat_idxs, sorted_cat_dims)):
        kk = jax.random.fold_in(ki, j)
        vals = jax.random.randint(kk, (B,), 0, cd).astype(jnp.float32)
        x = x.at[:, ci].set(vals)

    out = embedding_generator_forward(
        x, emb_tables,
        input_dim=input_dim, cat_idxs=sorted_cat_idxs,
        cat_dims=sorted_cat_dims, cat_emb_dims=sorted_emb_dims,
        tb=tb, weight_dtype=jnp.float32,
    )
    out = jax.block_until_ready(out)

    ref = reference_forward(
        x, emb_tables,
        input_dim=input_dim, cat_idxs=sorted_cat_idxs, cat_dims=sorted_cat_dims,
    )
    ref = jax.block_until_ready(ref)

    post_embed_dim = int(input_dim + sum(sorted_emb_dims) - len(sorted_emb_dims))
    assert out.shape == (B, post_embed_dim), out.shape
    np.testing.assert_allclose(np.asarray(out), np.asarray(ref), rtol=1e-5, atol=1e-5)

    print("KERNEL_OK")
</pallas_src>

<mosaic_0001>
module attributes {stable_mosaic.version = 11 : i64} {
  func.func @kernel(%arg0: i32, %arg1: memref<6x128xf32, #tpu.memory_space<vmem>>, %arg2: memref<15x6xf32, #tpu.memory_space<vmem>>, %arg3: memref<15x15xf32, #tpu.memory_space<vmem>>, %arg4: memref<15x128xf32, #tpu.memory_space<vmem>>) attributes {dimension_semantics = [#tpu.dimension_semantics<parallel>], iteration_bounds = array<i64: 2>, scalar_prefetch = 0 : i64, scratch_operands = 0 : i64, tpu.core_type = #tpu.core_type<tc>, window_params = [{transform_indices = @transform_0, window_bounds = array<i64: 6, 128>}, {pipeline_mode = #tpu.pipeline_mode<synchronous>, transform_indices = @transform_1, window_bounds = array<i64: 15, 6>}, {pipeline_mode = #tpu.pipeline_mode<synchronous>, transform_indices = @transform_2, window_bounds = array<i64: 15, 15>}, {transform_indices = @transform_3, window_bounds = array<i64: 15, 128>}]} {
    %c0 = arith.constant 0 : index
    %c0_0 = arith.constant 0 : index
    %0 = vector.load %arg1[%c0, %c0_0] : memref<6x128xf32, #tpu.memory_space<vmem>>, vector<6x128xf32>
    %1 = tpu.iota {dimensions = array<i32: 0>} : vector<15x128xi32>
    %cst = arith.constant 0.000000e+00 : f32
    %2 = vector.broadcast %cst : f32 to vector<15x128xf32>
    %3 = vector.extract_strided_slice %0 {offsets = [1, 0], sizes = [1, 128], strides = [1, 1]} : vector<6x128xf32> to vector<1x128xf32>
    %4 = arith.fptosi %3 : vector<1x128xf32> to vector<1x128xi32>
    %c0_i32 = arith.constant 0 : i32
    %5 = vector.broadcast %c0_i32 : i32 to vector<1x128xi32>
    %6 = arith.addi %4, %5 : vector<1x128xi32>
    %7 = vector.broadcast %6 : vector<1x128xi32> to vector<15x128xi32>
    %8 = arith.cmpi eq, %1, %7 : vector<15x128xi32>
    %9 = arith.extui %8 : vector<15x128xi1> to vector<15x128xi32>
    %10 = arith.sitofp %9 : vector<15x128xi32> to vector<15x128xf32>
    %11 = arith.addf %2, %10 : vector<15x128xf32>
    %12 = vector.extract_strided_slice %0 {offsets = [3, 0], sizes = [1, 128], strides = [1, 1]} : vector<6x128xf32> to vector<1x128xf32>
    %13 = arith.fptosi %12 : vector<1x128xf32> to vector<1x128xi32>
    %c5_i32 = arith.constant 5 : i32
    %14 = vector.broadcast %c5_i32 : i32 to vector<1x128xi32>
    %15 = arith.addi %13, %14 : vector<1x128xi32>
    %16 = vector.broadcast %15 : vector<1x128xi32> to vector<15x128xi32>
    %17 = arith.cmpi eq, %1, %16 : vector<15x128xi32>
    %18 = arith.extui %17 : vector<15x128xi1> to vector<15x128xi32>
    %19 = arith.sitofp %18 : vector<15x128xi32> to vector<15x128xf32>
    %20 = arith.addf %11, %19 : vector<15x128xf32>
    %21 = vector.extract_strided_slice %0 {offsets = [4, 0], sizes = [1, 128], strides = [1, 1]} : vector<6x128xf32> to vector<1x128xf32>
    %22 = arith.fptosi %21 : vector<1x128xf32> to vector<1x128xi32>
    %c12_i32 = arith.constant 12 : i32
    %23 = vector.broadcast %c12_i32 : i32 to vector<1x128xi32>
    %24 = arith.addi %22, %23 : vector<1x128xi32>
    %25 = vector.broadcast %24 : vector<1x128xi32> to vector<15x128xi32>
    %26 = arith.cmpi eq, %1, %25 : vector<15x128xi32>
    %27 = arith.extui %26 : vector<15x128xi1> to vector<15x128xi32>
    %28 = arith.sitofp %27 : vector<15x128xi32> to vector<15x128xf32>
    %29 = arith.addf %20, %28 : vector<15x128xf32>
    %c0_1 = arith.constant 0 : index
    %c0_2 = arith.constant 0 : index
    %30 = vector.load %arg2[%c0_1, %c0_2] : memref<15x6xf32, #tpu.memory_space<vmem>>, vector<15x6xf32>
    %cst_3 = arith.constant dense<0.000000e+00> : vector<15x128xf32>
    %31 = tpu.matmul %30, %0, %cst_3 {dimension_numbers = #tpu.dot_dimension_numbers<[1], [0], [0], [1], [0, 0, 1, 1], [], []>} : vector<15x6xf32>, vector<6x128xf32>, vector<15x128xf32> -> vector<15x128xf32>
    %c0_4 = arith.constant 0 : index
    %c0_5 = arith.constant 0 : index
    %32 = vector.load %arg3[%c0_4, %c0_5] : memref<15x15xf32, #tpu.memory_space<vmem>>, vector<15x15xf32>
    %cst_6 = arith.constant dense<0.000000e+00> : vector<15x128xf32>
    %33 = tpu.matmul %32, %29, %cst_6 {dimension_numbers = #tpu.dot_dimension_numbers<[1], [0], [0], [1], [0, 0, 1, 1], [], []>} : vector<15x15xf32>, vector<15x128xf32>, vector<15x128xf32> -> vector<15x128xf32>
    %34 = arith.addf %31, %33 : vector<15x128xf32>
    %c0_7 = arith.constant 0 : index
    %c0_8 = arith.constant 0 : index
    %35 = vector.load %arg4[%c0_7, %c0_8] : memref<15x128xf32, #tpu.memory_space<vmem>>, vector<15x128xf32>
    tpu.vector_store %arg4[%c0_7, %c0_8], %34 {strides = array<i32>} : memref<15x128xf32, #tpu.memory_space<vmem>>, vector<15x128xf32>,
    return
  }
  func.func @transform_0(%arg0: i32) -> (i32, i32) {
    %c0_i32 = arith.constant 0 : i32
    %c0_i32_0 = arith.constant 0 : i32
    return %c0_i32, %arg0 : i32, i32
  }
  func.func @transform_1(%arg0: i32) -> (i32, i32) {
    %c0_i32 = arith.constant 0 : i32
    %c0_i32_0 = arith.constant 0 : i32
    %c0_i32_1 = arith.constant 0 : i32
    return %c0_i32, %c0_i32_0 : i32, i32
  }
  func.func @transform_2(%arg0: i32) -> (i32, i32) {
    %c0_i32 = arith.constant 0 : i32
    %c0_i32_0 = arith.constant 0 : i32
    %c0_i32_1 = arith.constant 0 : i32
    return %c0_i32, %c0_i32_0 : i32, i32
  }
  func.func @transform_3(%arg0: i32) -> (i32, i32) {
    %c0_i32 = arith.constant 0 : i32
    %c0_i32_0 = arith.constant 0 : i32
    return %c0_i32, %arg0 : i32, i32
  }
}

</mosaic_0001>

<llo_original>
// kernel: tpu_custom_call.1
$region0: #{tpu_custom_call.1}
  #allocation0 [shape = 'u32[]', space=smem, size = 0x4, offset = 0x4, fixed_abs, tag = 'smem constant byte address 0x4 - core index']
  #allocation1 [shape = 'u32[72,128]{1,0:T(1,128)}', space=vmem, size = 0x9000, scoped, tag = 'internal scratch']
  %s0 = inlined_call_operand.vmem [shape: f32[6,256], index: 0, kind: input, shape index: {}]
  %s1 = inlined_call_operand.vmem [shape: f32[15,6], index: 1, kind: input, shape index: {}]
  %s2 = inlined_call_operand.hbm [shape: f32[15,15], index: 2, kind: input, shape index: {}]
  %s3 = inlined_call_operand.hbm [shape: f32[15,256], index: 3, kind: output, shape index: {}]
  %s4 = sld [smem:[#allocation0]]
  $region49: #{tpu_custom_call.1} parent=0
    _
  %s6 = ssub.s32 1, %s4
  %s7 = scalar_select 0, %s6, %s4
  $region1: #{tpu_custom_call.1} parent=0
    #allocation2 [shape = 'u8[8192]{0}', space=vmem, size = 0x2000, scoped, tag = 'input window, operand 2, single buffered']
    #allocation3 [shape = 's32[2]{0}', space=sflag, size = 0x8, scoped, tag = 'scoped memory for tpu_custom_call.1']
    #allocation4 [shape = 's32[2]{0}', space=sflag, size = 0x8, scoped, tag = 'scoped memory for tpu_custom_call.1']
    #allocation5 [shape = 'u8[16384]{0}', space=vmem, size = 0x4000, scoped, tag = 'output window, operand 0']
    %8 = vsyncpa [#allocation3], 0
    %9 = vsyncpa [#allocation4], 0
    %s10 = scalar_lea.sflag [#allocation4], 1
    %11 = vsyncpa %s10, 0
    loop: start=0, step=1, limit=4
    $region2: #{tpu_custom_call.1} parent=1 // loop_pre_header
      _
    $region3: #{tpu_custom_call.1} parent=1 // loop_header
      %s13 = sphi 0, %s17
      %p14 = scmp.ge.s32.totalorder %s13, 4
      %s23 = sphi 0, %s25
      %s26 = sphi 0, %s23
      %s27 = sphi 0, %s26
      %s43 = sphi 0, %s27
      %s47 = sphi 0, %s47
      %s49 = sphi 0, %s47
      %s50 = sphi 0, %s49
      %s64 = sphi 0, %s50
      %s68 = sphi 0, %s68
      %s70 = sphi 0, %s68
      %s71 = sphi 0, %s70
      %s85 = sphi 0, %s71
      %s91 = sphi 0, %s93
      %s94 = sphi 0, %s91
      %s95 = sphi 0, %s94
      %s111 = sphi 0, %s95
    $region4: #{tpu_custom_call.1} parent=1 // loop_header_branch
      %16 = sbr.rel (%p14) target = $region8
    $region5: #{tpu_custom_call.1} parent=1 // loop_body
      %s18 = ssub.s32 %s13, 1
      %s19 = ssub.s32 %s13, 2
      %s20 = sadd.s32 %s13, 1
      %s21 = ssub.s32 %s13, %s20
      %p22 = scmp.eq.s32.totalorder %s21, 0
      %s24 = sadd.s32 %s23, 1
      %s25 = scalar_select %p22, %s23, %s24
      %p28 = pneg %p22
      %p29 = scmp.eq.s32.totalorder %s13, 1
      %p30 = por %p28, %p29
      %p31 = scmp.ne.s32.totalorder %s23, %s26
      %p32 = scmp.eq.s32.totalorder %s13, 0
      %p33 = por %p31, %p32
      %p34 = scmp.ne.s32.totalorder %s23, %s26
      %p35 = scmp.eq.s32.totalorder %s18, 1
      %p36 = por %p34, %p35
      %p37 = scmp.ne.s32.totalorder %s26, %s27
      %p38 = scmp.eq.s32.totalorder %s18, 0
      %p39 = por %p37, %p38
      %p40 = scmp.ne.s32.totalorder %s26, %s27
      %p41 = scmp.eq.s32.totalorder %s19, 1
      %p42 = por %p40, %p41
      %p44 = scmp.ne.s32.totalorder %s27, %s43
      %p45 = scmp.eq.s32.totalorder %s19, 0
      %p46 = por %p44, %p45
      %s48 = sadd.s32 %s47, 1
      %p51 = scmp.eq.s32.totalorder %s13, 1
      %p52 = scmp.ne.s32.totalorder %s47, %s49
      %p53 = scmp.eq.s32.totalorder %s13, 0
      %p54 = por %p52, %p53
      %p55 = scmp.ne.s32.totalorder %s47, %s49
      %p56 = scmp.eq.s32.totalorder %s18, 1
      %p57 = por %p55, %p56
      %p58 = scmp.ne.s32.totalorder %s49, %s50
      %p59 = scmp.eq.s32.totalorder %s18, 0
      %p60 = por %p58, %p59
      %p61 = scmp.ne.s32.totalorder %s49, %s50
      %p62 = scmp.eq.s32.totalorder %s19, 1
      %p63 = por %p61, %p62
      %p65 = scmp.ne.s32.totalorder %s50, %s64
      %p66 = scmp.eq.s32.totalorder %s19, 0
      %p67 = por %p65, %p66
      %s69 = sadd.s32 %s68, 1
      %p72 = scmp.eq.s32.totalorder %s13, 1
      %p73 = scmp.ne.s32.totalorder %s68, %s70
      %p74 = scmp.eq.s32.totalorder %s13, 0
      %p75 = por %p73, %p74
      %p76 = scmp.ne.s32.totalorder %s68, %s70
      %p77 = scmp.eq.s32.totalorder %s18, 1
      %p78 = por %p76, %p77
      %p79 = scmp.ne.s32.totalorder %s70, %s71
      %p80 = scmp.eq.s32.totalorder %s18, 0
      %p81 = por %p79, %p80
      %p82 = scmp.ne.s32.totalorder %s70, %s71
      %p83 = scmp.eq.s32.totalorder %s19, 1
      %p84 = por %p82, %p83
      %p86 = scmp.ne.s32.totalorder %s71, %s85
      %p87 = scmp.eq.s32.totalorder %s19, 0
      %p88 = por %p86, %p87
      %s89 = ssub.s32 %s13, %s20
      %p90 = scmp.eq.s32.totalorder %s89, 0
      %s92 = sadd.s32 %s91, 1
      %s93 = scalar_select %p90, %s91, %s92
      %p96 = pneg %p90
      %p97 = scmp.eq.s32.totalorder %s13, 1
      %p98 = por %p96, %p97
      %p99 = scmp.ne.s32.totalorder %s91, %s94
      %p100 = scmp.eq.s32.totalorder %s13, 0
      %p101 = por %p99, %p100
      %p102 = scmp.ne.s32.totalorder %s91, %s94
      %p103 = scmp.eq.s32.totalorder %s18, 1
      %p104 = por %p102, %p103
      %p105 = scmp.ne.s32.totalorder %s94, %s95
      %p106 = scmp.eq.s32.totalorder %s18, 0
      %p107 = por %p105, %p106
      %p108 = scmp.ne.s32.totalorder %s94, %s95
      %p109 = scmp.eq.s32.totalorder %s19, 1
      %p110 = por %p108, %p109
      %p112 = scmp.ne.s32.totalorder %s95, %s111
      %p113 = scmp.eq.s32.totalorder %s19, 0
      %p114 = por %p112, %p113
      %p115 = scmp.le.s32.totalorder 1, %s13
      %p116 = scmp.lt.s32.totalorder %s13, 3
      %p117 = pnand %p115, %p116
      %p118 = pneg %p117
      // Predicated region
      $region9: #{tpu_custom_call.1} parent=5 // pred_check
        _
      $region10: #{tpu_custom_call.1} parent=5 // pred_check_branch
        %120 = sbr.rel (%p117) target = $region12
      $region11: #{tpu_custom_call.1} parent=5 // pred_region
        %s121 = ssub.s32 %s13, 1
        // Predicated region
        $region13: #{tpu_custom_call.1} parent=11 // pred_check
          %p122 = pneg %p60
        $region14: #{tpu_custom_call.1} parent=11 // pred_check_branch
          %124 = sbr.rel (%p122) target = $region16
        $region15: #{tpu_custom_call.1} parent=11 // pred_region
          _
        $region16: #{tpu_custom_call.1} parent=11 // pred_fallthru
          _
        // Predicated region
        $region17: #{tpu_custom_call.1} parent=11 // pred_check
          %p125 = pneg %p81
        $region18: #{tpu_custom_call.1} parent=11 // pred_check_branch
          %127 = sbr.rel (%p125) target = $region20
        $region19: #{tpu_custom_call.1} parent=11 // pred_region
          %129 = vsyncadd [#allocation3], 0
          %s130 = sshll.u32 %s2, 4
          %s131 = int_to_ptr.hbm [resolvable:$true] %s130
          %s132 = sshll.u32 [#allocation2], 4
          %s133 = int_to_ptr.vmem [resolvable:$true] %s132
          %138 = dma.hbm_to_vmem [thread:$0]  %s131, 256, %s133, [#allocation3], 128, 128, 8
        $region20: #{tpu_custom_call.1} parent=11 // pred_fallthru
          _
      $region12: #{tpu_custom_call.1} parent=5 // pred_fallthru
        _
      %p139 = scmp.lt.s32.totalorder %s13, 2
      // Predicated region
      $region21: #{tpu_custom_call.1} parent=5 // pred_check
        %p140 = pneg %p139
      $region22: #{tpu_custom_call.1} parent=5 // pred_check_branch
        %142 = sbr.rel (%p140) target = $region24
      $region23: #{tpu_custom_call.1} parent=5 // pred_region
        // Predicated region
        $region25: #{tpu_custom_call.1} parent=23 // pred_check
          %p143 = pneg %p33
        $region26: #{tpu_custom_call.1} parent=23 // pred_check_branch
          %145 = sbr.rel (%p143) target = $region28
        $region27: #{tpu_custom_call.1} parent=23 // pred_region
          %p146 = scmp.lt.s32.totalorder %s13, 1
          %s147 = scalar_select %p146, %s13, 1
          %s148 = smul.addr %s147, 8
          %s149 = scalar_lea.vmem %s0, %s148
        $region28: #{tpu_custom_call.1} parent=23 // pred_fallthru
          _
      $region24: #{tpu_custom_call.1} parent=5 // pred_fallthru
        _
      %p150 = scmp.le.s32.totalorder 1, %s13
      %p151 = scmp.lt.s32.totalorder %s13, 3
      %p152 = pnand %p150, %p151
      %p153 = pneg %p152
      // Predicated region
      $region29: #{tpu_custom_call.1} parent=5 // pred_check
        _
      $region30: #{tpu_custom_call.1} parent=5 // pred_check_branch
        %155 = sbr.rel (%p152) target = $region32
      $region31: #{tpu_custom_call.1} parent=5 // pred_region
        %s156 = ssub.s32 %s13, 1
        // Predicated region
        $region33: #{tpu_custom_call.1} parent=31 // pred_check
          %p157 = pneg %p81
        $region34: #{tpu_custom_call.1} parent=31 // pred_check_branch
          %159 = sbr.rel (%p157) target = $region36
        $region35: #{tpu_custom_call.1} parent=31 // pred_region
          %161 = dma.done [#allocation3], 256
        $region36: #{tpu_custom_call.1} parent=31 // pred_fallthru
          _
        %p162 = scmp.lt.s32.totalorder %s18, 1
        %s163 = scalar_select %p162, %s18, 1
        %s164 = smul.addr %s163, 8
        %s165 = scalar_lea.vmem %s0, %s164
        %p166 = pneg %p39
        %p167 = pneg %p36
        %p168 = pneg %p60
        %p169 = pneg %p57
        %p170 = pneg %p81
        %p171 = pneg %p78
        %p172 = pneg %p107
        %p173 = pneg %p104
        %s174 = sand.u32 %s94, 1
        %s175 = scalar_lea.sflag [#allocation4], %s174
        %s176 = sand.u32 %s94, 1
        %s177 = smul.addr %s176, 16
        %s178 = scalar_lea.vmem [#allocation5], %s177
        %p179 = scmp.lt.s32.totalorder %s18, 1
        %s180 = scalar_select %p179, %s18, 1
        %s181 = smul.addr %s180, 8
        %s182 = scalar_lea.vmem %s0, %s181
        %v183 = vld [vmem:[%s182] sm:$0x3f]
        %v184 = vlaneseq
        %v185 = vshrl.u32 %v184, 7
        %v186 = vadd.s32 %v185, 8
        %v187 = vcvt.f32.s32.to.zero.pseudo %v183
        %v188 = vperm.slane %v187, 1
        %vm189 = vcmp.eq.s32.totalorder %v185, %v188
        %vm190 = vcmp.eq.s32.totalorder %v186, %v188
        %v191 = vsel %vm189, 1, 0
        %v192 = vsel %vm190, 1, 0
        %v193 = vcvt.s32.f32 %v191
        %v194 = vcvt.s32.f32 %v192
        %v195 = vadd.f32 %v193, 0.0
        %v196 = vadd.f32 %v194, 0.0
        %v197 = vadd.s32 %v187, 5
        %v198 = vperm.slane %v197, 3
        %vm199 = vcmp.eq.s32.totalorder %v185, %v198
        %vm200 = vcmp.eq.s32.totalorder %v186, %v198
        %v201 = vsel %vm199, 1, 0
        %v202 = vsel %vm200, 1, 0
        %v203 = vcvt.s32.f32 %v201
        %v204 = vcvt.s32.f32 %v202
        %v205 = vadd.f32 %v195, %v203
        %v206 = vadd.f32 %v196, %v204
        %v207 = vadd.s32 %v187, 12
        %v208 = vperm.slane %v207, 4
        %vm209 = vcmp.eq.s32.totalorder %v185, %v208
        %vm210 = vcmp.eq.s32.totalorder %v186, %v208
        %v211 = vsel %vm209, 1, 0
        %v212 = vsel %vm210, 1, 0
        %v213 = vcvt.s32.f32 %v211
        %v214 = vcvt.s32.f32 %v212
        %v215 = vadd.f32 %v205, %v213
        %v216 = vadd.f32 %v206, %v214
        %v217 = vld [vmem:[%s1] sm:$0xff]
        %v218 = vld [vmem:[%s1 + $0x8] sm:$0x7f]
        %v219 = vld [vmem:[#allocation2] sm:$0xff]
        %v220 = vld [vmem:[#allocation2 + $0x8] sm:$0x7f]
        %vm221 = vcmask 121856
        %v223 = vsel %vm221, %v219, 0
        %v226 = vsel %vm221, %v220, 0
        %vm228 = vcmask 1046528
        %v230 = vsel %vm228, %v216, 0
        %232 = vmatpush.msra.mxu0 0.0
        %233 = vmatpush.msra.mxu0 0.0
        %234 = vmatpush.msra.mxu0 0.0
        %235 = vmatpush.msra.mxu0 0.0
        %236 = vmatpush.msra.mxu0 0.0
        %237 = vmatpush.msra.mxu0 0.0
        %238 = vmatpush.msra.mxu0 0.0
        %239 = vmatpush.msra.mxu0 0.0
        %240 = vmatpush.msra.mxu0 0.0
        %241 = vmatpush.msra.mxu0 0.0
        %242 = vmatpush.msra.mxu0 0.0
        %243 = vmatpush.msra.mxu0 0.0
        %244 = vmatpush.msra.mxu0 0.0
        %245 = vmatpush.msra.mxu0 0.0
        %246 = vmatpush.msra.mxu0 %v230
        %247 = vmatpush.msra.mxu0 %v215
        %248 = vmatmul.f32.gmra.mxu0 %v223
        %v249 = vpop.f32.mrf.mxu0
        %v250 = vadd.f32 0.0, %v249
        %251 = vmatmul.f32.gmra.mxu0 %v226
        %v252 = vpop.f32.mrf.mxu0
        %v253 = vadd.f32 0.0, %v252
        %254 = vdwg.mxu0
        %vm255 = vcmask 48128
        %v257 = vsel %vm255, %v217, 0
        %v260 = vsel %vm255, %v218, 0
        %vm262 = vcmask 1045504
        %v264 = vsel %vm262, %v183, 0
        %266 = vmatpush.msra.mxu0 0.0
        %267 = vmatpush.msra.mxu0 0.0
        %268 = vmatpush.msra.mxu0 0.0
        %269 = vmatpush.msra.mxu0 0.0
        %270 = vmatpush.msra.mxu0 0.0
        %271 = vmatpush.msra.mxu0 0.0
        %272 = vmatpush.msra.mxu0 0.0
        %273 = vmatpush.msra.mxu0 0.0
        %274 = vmatpush.msra.mxu0 0.0
        %275 = vmatpush.msra.mxu0 0.0
        %276 = vmatpush.msra.mxu0 0.0
        %277 = vmatpush.msra.mxu0 0.0
        %278 = vmatpush.msra.mxu0 0.0
        %279 = vmatpush.msra.mxu0 0.0
        %280 = vmatpush.msra.mxu0 0.0
        %281 = vmatpush.msra.mxu0 %v264
        %282 = vmatmul.f32.gmra.mxu0 %v257
        %v283 = vpop.f32.mrf.mxu0
        %v284 = vadd.f32 %v250, %v283
        %285 = vmatmul.f32.gmra.mxu0 %v260
        %v286 = vpop.f32.mrf.mxu0
        %v287 = vadd.f32 %v253, %v286
        %288 = vdwg.mxu0
        %289 = vst [vmem:[%s178] sm:$0xff] %v284
        %290 = vst [vmem:[%s178 + $0x8] sm:$0x7f] %v287
        %s291 = sand.u32 %s94, 1
        %s292 = scalar_lea.sflag [#allocation4], %s291
        %s293 = sand.u32 %s94, 1
        %s294 = smul.addr %s293, 16
        %s295 = scalar_lea.vmem [#allocation5], %s294
        // Predicated region
        $region37: #{tpu_custom_call.1} parent=31 // pred_check
          %p296 = pneg %p104
        $region38: #{tpu_custom_call.1} parent=31 // pred_check_branch
          %298 = sbr.rel (%p296) target = $region40
        $region39: #{tpu_custom_call.1} parent=31 // pred_region
          %300 = vsyncadd %s292, 0
          %s301 = smul.addr %s18, 8
          %s302 = scalar_lea.hbm %s3, %s301
          %s303 = sshll.u32 %s295, 4
          %s304 = int_to_ptr.vmem [resolvable:$true] %s303
          %s305 = sshll.u32 %s302, 4
          %s306 = int_to_ptr.hbm [resolvable:$true] %s305
          %311 = dma.vmem_to_hbm [thread:$0]  %s304, 256, %s306, %s292, 128, 256, 8
        $region40: #{tpu_custom_call.1} parent=31 // pred_fallthru
          _
      $region32: #{tpu_custom_call.1} parent=5 // pred_fallthru
        _
      %p312 = scmp.le.s32.totalorder 2, %s13
      // Predicated region
      $region41: #{tpu_custom_call.1} parent=5 // pred_check
        %p313 = pneg %p312
      $region42: #{tpu_custom_call.1} parent=5 // pred_check_branch
        %315 = sbr.rel (%p313) target = $region44
      $region43: #{tpu_custom_call.1} parent=5 // pred_region
        %s316 = ssub.s32 %s13, 2
        // Predicated region
        $region45: #{tpu_custom_call.1} parent=43 // pred_check
          %p317 = pneg %p110
        $region46: #{tpu_custom_call.1} parent=43 // pred_check_branch
          %319 = sbr.rel (%p317) target = $region48
        $region47: #{tpu_custom_call.1} parent=43 // pred_region
          %s320 = sand.u32 %s95, 1
          %s321 = scalar_lea.sflag [#allocation4], %s320
          %s322 = sand.u32 %s95, 1
          %s323 = smul.addr %s322, 16
          %s324 = scalar_lea.vmem [#allocation5], %s323
          %326 = dma.done %s321, 256
        $region48: #{tpu_custom_call.1} parent=43 // pred_fallthru
          _
      $region44: #{tpu_custom_call.1} parent=5 // pred_fallthru
        _
    $region6: #{tpu_custom_call.1} parent=1 // loop_footer
      %s17 = sadd.s32 1, %s13
    $region7: #{tpu_custom_call.1} parent=1 // loop_footer_branch
      %12 = sbr.rel target = $region3
    $region8: #{tpu_custom_call.1} parent=1 // loop_exit
      _
    %327 = vsyncpa [#allocation3], 1
    %s328 = scalar_lea.sflag [#allocation3], 1
    %329 = vsyncpa %s328, 1
    %330 = vsyncpa [#allocation4], 1
    %s331 = scalar_lea.sflag [#allocation4], 1
    %332 = vsyncpa %s331, 1

</llo_original>
